<compile_context>
chip_gen: v7x
topology: tpu7x:2x2x1
jax: 0.10.0
libtpu: 0.0.40
codegen_flags: <defaults>
</compile_context>

<pallas_src>
import jax
import jax.numpy as jnp
from jax.experimental import pallas as pl
from jax.experimental.pallas import tpu as pltpu

LANES = 128
SUBLANES = 8


def _xor_net_kernel(p_ref, x_ref, out_ref):
    # p_ref (SMEM, f32[9]) holds the *folded* parameters:
    #   [W1[0,0]/2, W1[0,1]/2, W1[1,0]/2, W1[1,1]/2,
    #    b1[0]/2,   b1[1]/2,
    #    W2[0,0]/4, W2[0,1]/4,
    #    b2[0]/2 + (W2[0,0]+W2[0,1])/4]
    # x_ref (VMEM, u32[rt,128]): lane = one sample; low 16 bits = bf16(x0),
    # high 16 bits = bf16(x1).
    z = x_ref[...]                                             # (rt, 128) uint32

    # bf16 -> f32 upcast is exactly "bf16 bits << 16" reinterpreted as f32.
    x0 = pltpu.bitcast(z << 16, jnp.float32)                   # feature 0
    x1 = pltpu.bitcast(z & jnp.uint32(0xFFFF0000), jnp.float32)  # feature 1

    a1_00 = p_ref[0]
    a1_01 = p_ref[1]
    a1_10 = p_ref[2]
    a1_11 = p_ref[3]
    c1_0 = p_ref[4]
    c1_1 = p_ref[5]
    a2_0 = p_ref[6]
    a2_1 = p_ref[7]
    c2 = p_ref[8]

    # sigmoid(u) = 0.5*tanh(u/2) + 0.5, with the 0.5 scalings pre-folded into
    # a*/c* so each hidden unit is just 2 mul + 2 add + 1 tanh (EUP).
    t0 = jnp.tanh(x0 * a1_00 + x1 * a1_01 + c1_0)              # 2*h0 - 1
    t1 = jnp.tanh(x0 * a1_10 + x1 * a1_11 + c1_1)              # 2*h1 - 1
    y = 0.5 * jnp.tanh(t0 * a2_0 + t1 * a2_1 + c2) + 0.5       # sigmoid(layer2(h))

    out_ref[...] = y.astype(out_ref.dtype)


def two_layer_xor_net(x, w1, b1, w2, b2, *, row_tile=2048, out_dtype=jnp.float32):
    """Fused 2-layer XOR MLP forward as a Pallas TPU kernel.

    Args:
      x:  (B, 2) float32 input (rounded to bf16 at the HBM boundary; math is f32).
      w1: (2, 2) float32, layer1 weight in PyTorch [out, in] layout.
      b1: (2,)   float32.
      w2: (1, 2) float32, layer2 weight in PyTorch [out, in] layout.
      b2: (1,)   float32.
      row_tile: target sublane rows per grid step (each row carries 128 samples).
      out_dtype: output dtype (jnp.bfloat16 cuts output HBM bytes a further 2x).
    Returns:
      (B, 1) out_dtype: sigmoid(layer2(sigmoid(layer1(x)))).
    """
    B = x.shape[0]

    # ---- batch tiling: 128 samples per sublane row --------------------------
    rows = pl.cdiv(B, LANES)                       # rows actually needed
    n_tiles = max(pl.cdiv(rows, row_tile), 1)
    if rows >= 2 * SUBLANES:
        n_tiles = max(n_tiles, 2)                  # >=2 tiles -> both TCs on v7x
    rt = pl.cdiv(pl.cdiv(rows, n_tiles), SUBLANES) * SUBLANES  # 8-row aligned tile
    rows_padded = n_tiles * rt                     # overshoot < 8 rows per tile
    b_padded = rows_padded * LANES

    # ---- pack both bf16 features of a sample into one uint32 lane -----------
    # Single fused elementwise pass over x (read 8 B, write 4 B per sample);
    # the kernel then reads exactly 4 B/sample from HBM.
    xb = x.astype(jnp.bfloat16)                                    # (B, 2) bf16
    u32 = jax.lax.bitcast_convert_type(xb, jnp.uint16).astype(jnp.uint32)
    packed = u32[:, 0] | (u32[:, 1] << 16)                         # (B,) uint32
    packed = jnp.pad(packed, (0, b_padded - B)).reshape(rows_padded, LANES)

    # ---- fold sigmoid's 0.5 scalings into the 9 scalars ----------------------
    w1f = w1.astype(jnp.float32).reshape(-1)       # [W100, W101, W110, W111]
    b1f = b1.astype(jnp.float32).reshape(-1)
    w2f = w2.astype(jnp.float32).reshape(-1)       # [W200, W201]
    b2f = b2.astype(jnp.float32).reshape(-1)
    params = jnp.concatenate([
        0.5 * w1f,
        0.5 * b1f,
        0.25 * w2f,
        (0.5 * b2f + 0.25 * (w2f[0] + w2f[1])).reshape(1),
    ]).astype(jnp.float32)                         # f32[9]

    lane_block = pl.BlockSpec((rt, LANES), lambda i: (i, 0))

    out = pl.pallas_call(
        _xor_net_kernel,
        out_shape=jax.ShapeDtypeStruct((rows_padded, LANES), out_dtype),
        grid=(n_tiles,),
        in_specs=[
            pl.BlockSpec(memory_space=pltpu.MemorySpace.SMEM),  # folded params
            lane_block,                                          # packed samples
        ],
        out_specs=lane_block,
        compiler_params=pltpu.CompilerParams(
            dimension_semantics=("parallel",),
        ),
    )(params, packed)

    # back to (B, 1)
    return out.reshape(b_padded, 1)[:B]


def init_params(key):
    """Deterministic init mirroring nn.Linear shapes (weight: [out, in])."""
    k1, k2, k3, k4 = jax.random.split(key, 4)
    lim = 1.0 / jnp.sqrt(2.0)   # U(-1/sqrt(fan_in), 1/sqrt(fan_in)), fan_in=2
    w1 = jax.random.uniform(k1, (2, 2), jnp.float32, -lim, lim)
    b1 = jax.random.uniform(k2, (2,), jnp.float32, -lim, lim)
    w2 = jax.random.uniform(k3, (1, 2), jnp.float32, -lim, lim)
    b2 = jax.random.uniform(k4, (1,), jnp.float32, -lim, lim)
    return w1, b1, w2, b2


def reference_forward(x, w1, b1, w2, b2):
    """Plain-JAX reference matching the PyTorch forward."""
    h = jax.nn.sigmoid(x @ w1.T + b1)
    return jax.nn.sigmoid(h @ w2.T + b2)


if __name__ == "__main__":
    key = jax.random.PRNGKey(0)
    kx, kp = jax.random.split(key)
    w1, b1, w2, b2 = init_params(kp)

    # ---- small primary case (single tile) ------------------------------------
    batch = 8
    x = jax.random.uniform(kx, (batch, 2), jnp.float32)   # XOR-style inputs
    out = jax.block_until_ready(two_layer_xor_net(x, w1, b1, w2, b2))
    assert out.shape == (batch, 1), out.shape

    # Reference on the same bf16-rounded inputs (apples-to-apples, tight tol).
    x_bf = x.astype(jnp.bfloat16).astype(jnp.float32)
    ref_bf = reference_forward(x_bf, w1, b1, w2, b2)
    assert jnp.allclose(out, ref_bf, atol=1e-5, rtol=1e-5), (out, ref_bf)
    # And against the pure-f32 module forward (only input rounding differs).
    ref_f32 = reference_forward(x, w1, b1, w2, b2)
    assert jnp.allclose(out, ref_f32, atol=1e-2, rtol=1e-2), (out, ref_f32)

    # ---- secondary case: multi-tile grid + ragged tail -----------------------
    batch2 = 4099
    x2 = jax.random.uniform(kx, (batch2, 2), jnp.float32)
    out2 = jax.block_until_ready(
        two_layer_xor_net(x2, w1, b1, w2, b2, row_tile=16))
    assert out2.shape == (batch2, 1), out2.shape
    ref2 = reference_forward(x2.astype(jnp.bfloat16).astype(jnp.float32),
                             w1, b1, w2, b2)
    assert jnp.allclose(out2, ref2, atol=1e-5, rtol=1e-5)

    print("KERNEL_OK")
</pallas_src>

<mosaic_0001>
module attributes {stable_mosaic.version = 11 : i64} {
  func.func @_xor_net_kernel(%arg0: i32, %arg1: memref<9xf32, #tpu.memory_space<smem>>, %arg2: memref<8x128xi32, #tpu.memory_space<vmem>>, %arg3: memref<8x128xf32, #tpu.memory_space<vmem>>) attributes {dimension_semantics = [#tpu.dimension_semantics<parallel>], iteration_bounds = array<i64: 1>, scalar_prefetch = 0 : i64, scratch_operands = 0 : i64, tpu.core_type = #tpu.core_type<tc>, window_params = [{transform_indices = @transform_0, window_bounds = array<i64: 9>}, {transform_indices = @transform_1, window_bounds = array<i64: 8, 128>}, {transform_indices = @transform_2, window_bounds = array<i64: 8, 128>}]} {
    %c0 = arith.constant 0 : index
    %c0_0 = arith.constant 0 : index
    %0 = vector.load %arg2[%c0, %c0_0] : memref<8x128xi32, #tpu.memory_space<vmem>>, vector<8x128xi32>
    %c16_i32 = arith.constant 16 : i32
    %1 = vector.broadcast %c16_i32 : i32 to vector<8x128xi32>
    %2 = arith.shli %0, %1 : vector<8x128xi32>
    %3 = tpu.bitcast %2 : vector<8x128xi32> -> vector<8x128xf32>
    %c-65536_i32 = arith.constant -65536 : i32
    %4 = vector.broadcast %c-65536_i32 : i32 to vector<8x128xi32>
    %5 = arith.andi %0, %4 : vector<8x128xi32>
    %6 = tpu.bitcast %5 : vector<8x128xi32> -> vector<8x128xf32>
    %c0_1 = arith.constant 0 : index
    %7 = memref.load %arg1[%c0_1] : memref<9xf32, #tpu.memory_space<smem>>
    %c1 = arith.constant 1 : index
    %8 = memref.load %arg1[%c1] : memref<9xf32, #tpu.memory_space<smem>>
    %c2 = arith.constant 2 : index
    %9 = memref.load %arg1[%c2] : memref<9xf32, #tpu.memory_space<smem>>
    %c3 = arith.constant 3 : index
    %10 = memref.load %arg1[%c3] : memref<9xf32, #tpu.memory_space<smem>>
    %c4 = arith.constant 4 : index
    %11 = memref.load %arg1[%c4] : memref<9xf32, #tpu.memory_space<smem>>
    %c5 = arith.constant 5 : index
    %12 = memref.load %arg1[%c5] : memref<9xf32, #tpu.memory_space<smem>>
    %c6 = arith.constant 6 : index
    %13 = memref.load %arg1[%c6] : memref<9xf32, #tpu.memory_space<smem>>
    %c7 = arith.constant 7 : index
    %14 = memref.load %arg1[%c7] : memref<9xf32, #tpu.memory_space<smem>>
    %c8 = arith.constant 8 : index
    %15 = memref.load %arg1[%c8] : memref<9xf32, #tpu.memory_space<smem>>
    %16 = vector.broadcast %7 : f32 to vector<8x128xf32>
    %17 = arith.mulf %3, %16 : vector<8x128xf32>
    %18 = vector.broadcast %8 : f32 to vector<8x128xf32>
    %19 = arith.mulf %6, %18 : vector<8x128xf32>
    %20 = arith.addf %17, %19 : vector<8x128xf32>
    %21 = vector.broadcast %11 : f32 to vector<8x128xf32>
    %22 = arith.addf %20, %21 : vector<8x128xf32>
    %23 = math.tanh %22 : vector<8x128xf32>
    %24 = vector.broadcast %9 : f32 to vector<8x128xf32>
    %25 = arith.mulf %3, %24 : vector<8x128xf32>
    %26 = vector.broadcast %10 : f32 to vector<8x128xf32>
    %27 = arith.mulf %6, %26 : vector<8x128xf32>
    %28 = arith.addf %25, %27 : vector<8x128xf32>
    %29 = vector.broadcast %12 : f32 to vector<8x128xf32>
    %30 = arith.addf %28, %29 : vector<8x128xf32>
    %31 = math.tanh %30 : vector<8x128xf32>
    %32 = vector.broadcast %13 : f32 to vector<8x128xf32>
    %33 = arith.mulf %23, %32 : vector<8x128xf32>
    %34 = vector.broadcast %14 : f32 to vector<8x128xf32>
    %35 = arith.mulf %31, %34 : vector<8x128xf32>
    %36 = arith.addf %33, %35 : vector<8x128xf32>
    %37 = vector.broadcast %15 : f32 to vector<8x128xf32>
    %38 = arith.addf %36, %37 : vector<8x128xf32>
    %39 = math.tanh %38 : vector<8x128xf32>
    %cst = arith.constant 5.000000e-01 : f32
    %40 = vector.broadcast %cst : f32 to vector<8x128xf32>
    %41 = arith.mulf %40, %39 : vector<8x128xf32>
    %cst_2 = arith.constant 5.000000e-01 : f32
    %42 = vector.broadcast %cst_2 : f32 to vector<8x128xf32>
    %43 = arith.addf %41, %42 : vector<8x128xf32>
    %c0_3 = arith.constant 0 : index
    %c0_4 = arith.constant 0 : index
    %44 = vector.load %arg3[%c0_3, %c0_4] : memref<8x128xf32, #tpu.memory_space<vmem>>, vector<8x128xf32>
    tpu.vector_store %arg3[%c0_3, %c0_4], %43 {strides = array<i32>} : memref<8x128xf32, #tpu.memory_space<vmem>>, vector<8x128xf32>,
    return
  }
  func.func @transform_0(%arg0: i32) -> i32 {
    %c0_i32 = arith.constant 0 : i32
    %c0_i32_0 = arith.constant 0 : i32
    return %c0_i32 : i32
  }
  func.func @transform_1(%arg0: i32) -> (i32, i32) {
    %c0_i32 = arith.constant 0 : i32
    %c0_i32_0 = arith.constant 0 : i32
    return %arg0, %c0_i32 : i32, i32
  }
  func.func @transform_2(%arg0: i32) -> (i32, i32) {
    %c0_i32 = arith.constant 0 : i32
    %c0_i32_0 = arith.constant 0 : i32
    return %arg0, %c0_i32 : i32, i32
  }
}

</mosaic_0001>

<llo_original>
// kernel: tpu_custom_call.1
$region0: #{tpu_custom_call.1}
  #allocation0 [shape = 'u32[]', space=smem, size = 0x4, offset = 0x4, fixed_abs, tag = 'smem constant byte address 0x4 - core index']
  #allocation1 [shape = 'u32[144,128]{1,0:T(1,128)}', space=vmem, size = 0x12000, scoped, tag = 'internal scratch']
  %s0 = inlined_call_operand.hbm [shape: f32[9], index: 0, kind: input, shape index: {}]
  %s1 = inlined_call_operand.hbm [shape: u32[8,128], index: 1, kind: input, shape index: {}]
  %s2 = inlined_call_operand.hbm [shape: f32[8,128], index: 2, kind: output, shape index: {}]
  %s3 = sld [smem:[#allocation0]]
  $region26: #{tpu_custom_call.1} parent=0
    _
  %s5 = ssub.s32 1, %s3
  %s6 = scalar_select 0, %s5, %s3
  $region1: #{tpu_custom_call.1} parent=0
    #allocation2 [shape = 'u8[512]{0}', space=smem, size = 0x200, scoped, tag = 'input window, operand 0, single buffered']
    #allocation3 [shape = 's32[1]{0}', space=sflag, size = 0x4, scoped, tag = 'scoped memory for tpu_custom_call.1']
    #allocation4 [shape = 's32[1]{0}', space=sflag, size = 0x4, scoped, tag = 'scoped memory for tpu_custom_call.1']
    #allocation5 [shape = 's32[1]{0}', space=sflag, size = 0x4, scoped, tag = 'scoped memory for tpu_custom_call.1']
    #allocation6 [shape = 'u8[4096]{0}', space=vmem, size = 0x1000, scoped, tag = 'input window, operand 1, single buffered']
    #allocation7 [shape = 'u8[4096]{0}', space=vmem, size = 0x1000, scoped, tag = 'output window, operand 0, single buffered']
    %7 = vsyncpa [#allocation5], 0
    %8 = vsyncpa [#allocation3], 0
    %9 = vsyncpa [#allocation4], 0
    // Predicated region
    $region2: #{tpu_custom_call.1} parent=1 // pred_check
      _
    $region3: #{tpu_custom_call.1} parent=1 // pred_check_branch
      %11 = sbr.rel (0) target = $region5
    $region4: #{tpu_custom_call.1} parent=1 // pred_region
      %s13 = ssub.s32 16, 16
      %14 = vsyncadd [#allocation5], %s13
      %17 = dma.hbm_to_smem %s0, 16, [#allocation2], [#allocation5]
    $region5: #{tpu_custom_call.1} parent=1 // pred_fallthru
      _
    // Predicated region
    $region6: #{tpu_custom_call.1} parent=1 // pred_check
      _
    $region7: #{tpu_custom_call.1} parent=1 // pred_check_branch
      %19 = sbr.rel (0) target = $region9
    $region8: #{tpu_custom_call.1} parent=1 // pred_region
      %s21 = ssub.s32 128, 128
      %22 = vsyncadd [#allocation3], %s21
      %s24 = sshll.u32 [#allocation6], 4
      %s25 = int_to_ptr.vmem [resolvable:$true] %s24
      %27 = dma.hbm_to_vmem [thread:$0]  %s1, 128, %s25, [#allocation3]
    $region9: #{tpu_custom_call.1} parent=1 // pred_fallthru
      _
    // Predicated region
    $region10: #{tpu_custom_call.1} parent=1 // pred_check
      _
    $region11: #{tpu_custom_call.1} parent=1 // pred_check_branch
      %29 = sbr.rel (0) target = $region13
    $region12: #{tpu_custom_call.1} parent=1 // pred_region
      %30 = dma.done [#allocation5], 16
    $region13: #{tpu_custom_call.1} parent=1 // pred_fallthru
      _
    // Predicated region
    $region14: #{tpu_custom_call.1} parent=1 // pred_check
      _
    $region15: #{tpu_custom_call.1} parent=1 // pred_check_branch
      %32 = sbr.rel (0) target = $region17
    $region16: #{tpu_custom_call.1} parent=1 // pred_region
      %33 = dma.done [#allocation3], 128
    $region17: #{tpu_custom_call.1} parent=1 // pred_fallthru
      _
    %34 = sfence
    %v35 = vld [vmem:[#allocation6] sm:$0xff]
    %v36 = vshll.u32 %v35, 16
    %v38 = vand.u32 %v35, 4294901760
    %s40 = sld [smem:[#allocation2]]
    %s41 = sld [smem:[#allocation2 + $0x1]]
    %s42 = sld [smem:[#allocation2 + $0x2]]
    %s43 = sld [smem:[#allocation2 + $0x3]]
    %s44 = sld [smem:[#allocation2 + $0x4]]
    %s45 = sld [smem:[#allocation2 + $0x5]]
    %s46 = sld [smem:[#allocation2 + $0x6]]
    %s47 = sld [smem:[#allocation2 + $0x7]]
    %s48 = sld [smem:[#allocation2 + $0x8]]
    %v49 = vstv %s40
    %v50 = vmul.f32 %v36, %v49
    %v51 = vstv %s41
    %v52 = vmul.f32 %v38, %v51
    %v53 = vadd.f32 %v50, %v52
    %v54 = vstv %s44
    %v55 = vadd.f32 %v53, %v54
    %v56 = vtanh.pop %v55
    %v57 = vstv %s42
    %v58 = vmul.f32 %v36, %v57
    %v59 = vstv %s43
    %v60 = vmul.f32 %v38, %v59
    %v61 = vadd.f32 %v58, %v60
    %v62 = vstv %s45
    %v63 = vadd.f32 %v61, %v62
    %v64 = vtanh.pop %v63
    %v65 = vstv %s46
    %v66 = vmul.f32 %v56, %v65
    %v67 = vstv %s47
    %v68 = vmul.f32 %v64, %v67
    %v69 = vadd.f32 %v66, %v68
    %v70 = vstv %s48
    %v71 = vadd.f32 %v69, %v70
    %v72 = vtanh.pop %v71
    %v73 = vmul.f32 %v72, 0.5
    %v74 = vadd.f32 %v73, 0.5
    %75 = vst [vmem:[#allocation7] sm:$0xff] %v74
    // Predicated region
    $region18: #{tpu_custom_call.1} parent=1 // pred_check
      _
    $region19: #{tpu_custom_call.1} parent=1 // pred_check_branch
      %77 = sbr.rel (0) target = $region21
    $region20: #{tpu_custom_call.1} parent=1 // pred_region
      %s79 = ssub.s32 128, 128
      %80 = vsyncadd [#allocation4], %s79
      %s82 = sshll.u32 [#allocation7], 4
      %s83 = int_to_ptr.vmem [resolvable:$true] %s82
      %85 = dma.vmem_to_hbm [thread:$0]  %s83, 128, %s2, [#allocation4]
    $region21: #{tpu_custom_call.1} parent=1 // pred_fallthru
      _
    // Predicated region
    $region22: #{tpu_custom_call.1} parent=1 // pred_check
      _
    $region23: #{tpu_custom_call.1} parent=1 // pred_check_branch
      %87 = sbr.rel (0) target = $region25
    $region24: #{tpu_custom_call.1} parent=1 // pred_region
      %88 = dma.done [#allocation4], 128
    $region25: #{tpu_custom_call.1} parent=1 // pred_fallthru
      _
    %89 = vsyncpa [#allocation3], 1
    %90 = vsyncpa [#allocation4], 1
    %91 = vsyncpa [#allocation5], 1

</llo_original>
